<compile_context>
chip_gen: v7x
topology: tpu7x:2x2x1
jax: 0.10.0
libtpu: 0.0.40
codegen_flags: <defaults>
</compile_context>

<pallas_src>
import functools

import jax
import jax.numpy as jnp
from jax import lax
from jax.experimental import pallas as pl
from jax.experimental.pallas import tpu as pltpu

NUM_CLASSES = 5


def _round_up(x, m):
    return ((x + m - 1) // m) * m


def mlp_kernel(x_ref, w_ref, b_ref, o_ref):
    """Fused (pre-folded) affine map: o = x @ W_comb + b_comb, on the VPU.

    x_ref: [TB, d_in] (d_in tiny, e.g. 2)
    w_ref: [d_in, d_out]
    b_ref: [1, d_out]
    o_ref: [TB, d_out]
    """
    x = x_ref[...]
    w = w_ref[...]
    b = b_ref[...]
    tb = x.shape[0]
    d_in, d_out = w.shape

    # Start from the (sublane-broadcast) bias, then unroll d_in broadcast FMAs.
    acc = jnp.broadcast_to(b, (tb, d_out))
    for k in range(d_in):  # d_in is static & tiny -> fully unrolled VPU FMAs
        acc = acc + x[:, k:k + 1] * w[k:k + 1, :]
    o_ref[...] = acc.astype(o_ref.dtype)


def prepare_params(w1, b1, w2, b2):
    """One-time prep: fold the two activation-free linears into one affine map.

    y = (x @ w1.T + b1) @ w2.T + b2 = x @ (w1.T @ w2.T) + (b1 @ w2.T + b2)

    Exact only because activation=None in the reference module.
    Returns (W_comb [d_in, d_out], b_comb [1, d_out]) as f32 device arrays.
    """
    w1 = w1.astype(jnp.float32)
    b1 = b1.astype(jnp.float32)
    w2 = w2.astype(jnp.float32)
    b2 = b2.astype(jnp.float32)
    # HIGHEST precision here is a one-time cost; keeps the fold f32-accurate.
    w_comb = jnp.dot(w1.T, w2.T, precision=lax.Precision.HIGHEST)
    b_comb = (jnp.dot(b1, w2.T, precision=lax.Precision.HIGHEST) + b2)[None, :]
    return jax.device_put(w_comb), jax.device_put(b_comb)


def _choose_batch_tiling(batch):
    """Returns (Bp, TB, grid): padded batch, tile rows, number of tiles.

    Pads the batch only to a multiple of 8 for small batches; for large
    batches uses >= 2 tiles (v7x megacore) of <= 2048 rows, padding < 8 rows
    per tile.
    """
    bp8 = _round_up(batch, 8)
    if bp8 <= 1024:
        return bp8, bp8, 1
    n_tiles = max(2, -(-bp8 // 2048))
    tb = _round_up(-(-bp8 // n_tiles), 8)
    grid = -(-bp8 // tb)
    return tb * grid, tb, grid


@jax.jit
def simple_mlp_forward(x, w_comb, b_comb):
    """x: [B, d_in]; w_comb: [d_in, d_out]; b_comb: [1, d_out] -> [B, d_out]."""
    B, d_in = x.shape
    d_out = w_comb.shape[1]

    Bp, TB, grid = _choose_batch_tiling(B)

    x_p = x.astype(jnp.float32)
    if Bp != B:
        x_p = jnp.pad(x_p, ((0, Bp - B), (0, 0)))

    out_p = pl.pallas_call(
        mlp_kernel,
        out_shape=jax.ShapeDtypeStruct((Bp, d_out), jnp.float32),
        grid_spec=pltpu.PrefetchScalarGridSpec(
            num_scalar_prefetch=0,
            grid=(grid,),
            in_specs=[
                # x tiled over batch; feature dim left at its true width
                # (last block dim == full array dim -> no 128 padding needed).
                pl.BlockSpec((TB, d_in), lambda i: (i, 0)),
                # Folded weight / bias: tiny, VMEM-resident across all tiles.
                pl.BlockSpec((d_in, d_out), lambda i: (0, 0)),
                pl.BlockSpec((1, d_out), lambda i: (0, 0)),
            ],
            # Narrow output written directly (last block dim == full array dim).
            out_specs=pl.BlockSpec((TB, d_out), lambda i: (i, 0)),
        ),
        compiler_params=pltpu.CompilerParams(
            # Batch tiles are independent -> shard across v7x's 2 TensorCores
            # (harmless no-op on single-TC v5e/v6e).
            dimension_semantics=("parallel",),
        ),
    )(x_p, w_comb, b_comb)

    return out_p[:B] if Bp != B else out_p


def init_params(key, input_size=2, hidden_size=4, output_size=NUM_CLASSES):
    """Deterministic init mimicking PyTorch nn.Linear defaults (U(-1/sqrt(in), 1/sqrt(in)))."""
    k1, k2, k3, k4 = jax.random.split(key, 4)
    lim1 = 1.0 / jnp.sqrt(jnp.float32(input_size))
    lim2 = 1.0 / jnp.sqrt(jnp.float32(hidden_size))
    w1 = jax.random.uniform(k1, (hidden_size, input_size), jnp.float32, -lim1, lim1)
    b1 = jax.random.uniform(k2, (hidden_size,), jnp.float32, -lim1, lim1)
    w2 = jax.random.uniform(k3, (output_size, hidden_size), jnp.float32, -lim2, lim2)
    b2 = jax.random.uniform(k4, (output_size,), jnp.float32, -lim2, lim2)
    return w1, b1, w2, b2


if __name__ == "__main__":
    key = jax.random.PRNGKey(0)
    k_x, k_p = jax.random.split(key)

    batch, input_size, hidden_size, output_size = 8, 2, 4, NUM_CLASSES
    x = jax.random.normal(k_x, (batch, input_size), jnp.float32)
    w1, b1, w2, b2 = init_params(k_p, input_size, hidden_size, output_size)

    # One-time parameter prep (layer folding), hoisted out of the forward pass.
    w_comb, b_comb = prepare_params(w1, b1, w2, b2)

    logits = simple_mlp_forward(x, w_comb, b_comb)
    logits = jax.block_until_ready(logits)

    # Plain-JAX reference of the original two-layer forward pass (f32-accurate).
    h_ref = jnp.dot(x, w1.T, precision=lax.Precision.HIGHEST) + b1
    ref = jnp.dot(h_ref, w2.T, precision=lax.Precision.HIGHEST) + b2

    assert logits.shape == (batch, output_size)
    assert jnp.allclose(logits, ref, atol=1e-5, rtol=1e-5)

    print("KERNEL_OK")
</pallas_src>

<mosaic_0001>
module attributes {stable_mosaic.version = 11 : i64} {
  func.func @mlp_kernel(%arg0: i32, %arg1: memref<8x2xf32, #tpu.memory_space<vmem>>, %arg2: memref<2x5xf32, #tpu.memory_space<vmem>>, %arg3: memref<1x5xf32, #tpu.memory_space<vmem>>, %arg4: memref<8x5xf32, #tpu.memory_space<vmem>>) attributes {dimension_semantics = [#tpu.dimension_semantics<parallel>], iteration_bounds = array<i64: 1>, scalar_prefetch = 0 : i64, scratch_operands = 0 : i64, tpu.core_type = #tpu.core_type<tc>, window_params = [{transform_indices = @transform_0, window_bounds = array<i64: 8, 2>}, {pipeline_mode = #tpu.pipeline_mode<synchronous>, transform_indices = @transform_1, window_bounds = array<i64: 2, 5>}, {pipeline_mode = #tpu.pipeline_mode<synchronous>, transform_indices = @transform_2, window_bounds = array<i64: 1, 5>}, {transform_indices = @transform_3, window_bounds = array<i64: 8, 5>}]} {
    %c0 = arith.constant 0 : index
    %c0_0 = arith.constant 0 : index
    %0 = vector.load %arg1[%c0, %c0_0] : memref<8x2xf32, #tpu.memory_space<vmem>>, vector<8x2xf32>
    %c0_1 = arith.constant 0 : index
    %c0_2 = arith.constant 0 : index
    %1 = vector.load %arg2[%c0_1, %c0_2] : memref<2x5xf32, #tpu.memory_space<vmem>>, vector<2x5xf32>
    %c0_3 = arith.constant 0 : index
    %c0_4 = arith.constant 0 : index
    %2 = vector.load %arg3[%c0_3, %c0_4] : memref<1x5xf32, #tpu.memory_space<vmem>>, vector<1x5xf32>
    %3 = vector.shape_cast %2 : vector<1x5xf32> to vector<1x5xf32>
    %4 = vector.broadcast %3 : vector<1x5xf32> to vector<8x5xf32>
    %5 = vector.extract_strided_slice %0 {offsets = [0, 0], sizes = [8, 1], strides = [1, 1]} : vector<8x2xf32> to vector<8x1xf32>
    %6 = vector.extract_strided_slice %1 {offsets = [0, 0], sizes = [1, 5], strides = [1, 1]} : vector<2x5xf32> to vector<1x5xf32>
    %7 = vector.broadcast %5 : vector<8x1xf32> to vector<8x5xf32>
    %8 = vector.broadcast %6 : vector<1x5xf32> to vector<8x5xf32>
    %9 = arith.mulf %7, %8 : vector<8x5xf32>
    %10 = arith.addf %4, %9 : vector<8x5xf32>
    %11 = vector.extract_strided_slice %0 {offsets = [0, 1], sizes = [8, 1], strides = [1, 1]} : vector<8x2xf32> to vector<8x1xf32>
    %12 = vector.extract_strided_slice %1 {offsets = [1, 0], sizes = [1, 5], strides = [1, 1]} : vector<2x5xf32> to vector<1x5xf32>
    %13 = vector.broadcast %11 : vector<8x1xf32> to vector<8x5xf32>
    %14 = vector.broadcast %12 : vector<1x5xf32> to vector<8x5xf32>
    %15 = arith.mulf %13, %14 : vector<8x5xf32>
    %16 = arith.addf %10, %15 : vector<8x5xf32>
    %c0_5 = arith.constant 0 : index
    %c0_6 = arith.constant 0 : index
    %17 = vector.load %arg4[%c0_5, %c0_6] : memref<8x5xf32, #tpu.memory_space<vmem>>, vector<8x5xf32>
    tpu.vector_store %arg4[%c0_5, %c0_6], %16 {strides = array<i32>} : memref<8x5xf32, #tpu.memory_space<vmem>>, vector<8x5xf32>,
    return
  }
  func.func @transform_0(%arg0: i32) -> (i32, i32) {
    %c0_i32 = arith.constant 0 : i32
    %c0_i32_0 = arith.constant 0 : i32
    return %arg0, %c0_i32 : i32, i32
  }
  func.func @transform_1(%arg0: i32) -> (i32, i32) {
    %c0_i32 = arith.constant 0 : i32
    %c0_i32_0 = arith.constant 0 : i32
    %c0_i32_1 = arith.constant 0 : i32
    return %c0_i32, %c0_i32_0 : i32, i32
  }
  func.func @transform_2(%arg0: i32) -> (i32, i32) {
    %c0_i32 = arith.constant 0 : i32
    %c0_i32_0 = arith.constant 0 : i32
    %c0_i32_1 = arith.constant 0 : i32
    return %c0_i32, %c0_i32_0 : i32, i32
  }
  func.func @transform_3(%arg0: i32) -> (i32, i32) {
    %c0_i32 = arith.constant 0 : i32
    %c0_i32_0 = arith.constant 0 : i32
    return %arg0, %c0_i32 : i32, i32
  }
}

</mosaic_0001>

<llo_original>
// kernel: simple_mlp_forward.1
$region0: #{simple_mlp_forward.1}
  #allocation0 [shape = 'u32[]', space=smem, size = 0x4, offset = 0x4, fixed_abs, tag = 'smem constant byte address 0x4 - core index']
  #allocation1 [shape = 'u32[144,128]{1,0:T(1,128)}', space=vmem, size = 0x12000, scoped, tag = 'internal scratch']
  %s0 = inlined_call_operand.vmem [shape: f32[8,2], index: 0, kind: input, shape index: {}]
  %s1 = inlined_call_operand.vmem [shape: f32[2,5], index: 1, kind: input, shape index: {}]
  %s2 = inlined_call_operand.vmem [shape: f32[1,5], index: 2, kind: input, shape index: {}]
  %s3 = inlined_call_operand.hbm [shape: f32[8,5], index: 3, kind: output, shape index: {}]
  %s4 = sld [smem:[#allocation0]]
  $region22: #{simple_mlp_forward.1} parent=0
    _
  %s6 = ssub.s32 1, %s4
  %s7 = scalar_select 0, %s6, %s4
  $region1: #{simple_mlp_forward.1} parent=0
    #allocation2 [shape = 'u8[4096]{0}', space=vmem, size = 0x1000, scoped, tag = 'output window, operand 0, single buffered']
    #allocation3 [shape = 's32[1]{0}', space=sflag, size = 0x4, scoped, tag = 'scoped memory for simple_mlp_forward.1']
    %8 = vsyncpa [#allocation3], 0
    // Predicated region
    $region2: #{simple_mlp_forward.1} parent=1 // pred_check
      _
    $region3: #{simple_mlp_forward.1} parent=1 // pred_check_branch
      %10 = sbr.rel (0) target = $region5
    $region4: #{simple_mlp_forward.1} parent=1 // pred_region
      _
    $region5: #{simple_mlp_forward.1} parent=1 // pred_fallthru
      _
    // Predicated region
    $region6: #{simple_mlp_forward.1} parent=1 // pred_check
      _
    $region7: #{simple_mlp_forward.1} parent=1 // pred_check_branch
      %12 = sbr.rel (0) target = $region9
    $region8: #{simple_mlp_forward.1} parent=1 // pred_region
      _
    $region9: #{simple_mlp_forward.1} parent=1 // pred_fallthru
      _
    // Predicated region
    $region10: #{simple_mlp_forward.1} parent=1 // pred_check
      _
    $region11: #{simple_mlp_forward.1} parent=1 // pred_check_branch
      %14 = sbr.rel (0) target = $region13
    $region12: #{simple_mlp_forward.1} parent=1 // pred_region
      _
    $region13: #{simple_mlp_forward.1} parent=1 // pred_fallthru
      _
    %v15 = vld [vmem:[%s0] sm:$0xff]
    %v16 = vld [vmem:[%s1] sm:$0x3]
    %v17 = vld [vmem:[%s2] sm:$0x1]
    %v19 = vlaneseq
    %v20 = vshrl.u32 %v19, 7
    %v21 = vsub.s32 0, %v20
    %v22 = vrot.slane %v17, %v21
    %25 = vset.pattern.permute.xlu0 0
    %26 = vperm.xlu0 %25, %v15
    %v27 = vpop.permute.xlu0 %26
    %v29 = vlaneseq
    %v30 = vshrl.u32 %v29, 7
    %v31 = vsub.s32 0, %v30
    %v32 = vrot.slane %v16, %v31
    %v33 = vmul.f32 %v27, %v32
    %v34 = vadd.f32 %v22, %v33
    %35 = vset.pattern.permute.xlu0 1
    %36 = vperm.xlu0 %35, %v15
    %v37 = vpop.permute.xlu0 %36
    %v39 = vlaneseq
    %v40 = vshrl.u32 %v39, 7
    %v41 = vsub.s32 1, %v40
    %v42 = vrot.slane %v16, %v41
    %v43 = vmul.f32 %v37, %v42
    %v44 = vadd.f32 %v34, %v43
    %vm45 = vcmask 39936
    %46 = vst.msk [vmem:[#allocation2] sm:$0xff] %vm45, %v44
    // Predicated region
    $region14: #{simple_mlp_forward.1} parent=1 // pred_check
      _
    $region15: #{simple_mlp_forward.1} parent=1 // pred_check_branch
      %48 = sbr.rel (0) target = $region17
    $region16: #{simple_mlp_forward.1} parent=1 // pred_region
      %s50 = ssub.s32 128, 128
      %51 = vsyncadd [#allocation3], %s50
      %s53 = sshll.u32 [#allocation2], 4
      %s54 = int_to_ptr.vmem [resolvable:$true] %s53
      %56 = dma.vmem_to_hbm [thread:$0]  %s54, 128, %s3, [#allocation3]
    $region17: #{simple_mlp_forward.1} parent=1 // pred_fallthru
      _
    // Predicated region
    $region18: #{simple_mlp_forward.1} parent=1 // pred_check
      _
    $region19: #{simple_mlp_forward.1} parent=1 // pred_check_branch
      %58 = sbr.rel (0) target = $region21
    $region20: #{simple_mlp_forward.1} parent=1 // pred_region
      %59 = dma.done [#allocation3], 128
    $region21: #{simple_mlp_forward.1} parent=1 // pred_fallthru
      _
    %60 = vsyncpa [#allocation3], 1

</llo_original>
